<compile_context>
chip_gen: v7x
topology: tpu7x:2x2x1
jax: 0.10.0
libtpu: 0.0.40
codegen_flags: <defaults>
</compile_context>

<pallas_src>
import functools

import jax
import jax.numpy as jnp
from jax import lax
from jax.experimental import pallas as pl
from jax.experimental.pallas import tpu as pltpu


def _round_up(x, m):
    return -(-x // m) * m


def _pick_chunk(T, max_chunk=16):
    for tc in range(min(max_chunk, T), 0, -1):
        if T % tc == 0:
            return tc
    return 1


# ---------------------------------------------------------------------------
# Hoisted input projection (one big matmul, outside the recurrence).
# ---------------------------------------------------------------------------
def _input_projection(x, packed):
    """x @ W_ih^T + (b_ih + b_hh); works for (B, D) or (T, B, D)."""
    D, H = packed["input_dim"], packed["hidden_dim"]
    mm = packed["w_in"].dtype
    flat = x.reshape(-1, D).astype(mm)
    proj = jnp.dot(flat, packed["w_in"],
                   preferred_element_type=jnp.float32) + packed["b_gates"]
    return proj.reshape(x.shape[:-1] + (4 * H,))


# ---------------------------------------------------------------------------
# Single-step kernel: one packed lane-dense output slab [h | c | mean | var | pad].
# ---------------------------------------------------------------------------
def srnn_step_kernel(xp_ref, h_ref, c_ref, w_ref, bh_ref, out_ref, *, dims):
    H, O = dims["hidden_dim"], dims["output_dim"]
    O2 = 2 * O
    mm = w_ref.dtype

    h = h_ref[...]
    c = c_ref[...]
    B = h.shape[0]

    # Recurrent gate matmul only (x @ W_ih was hoisted to the host projection).
    gates = xp_ref[...] + jnp.dot(h.astype(mm), w_ref[:H, :],
                                  preferred_element_type=jnp.float32)

    # Two full-vreg EUP passes instead of four sub-vreg ones.
    sig = jax.nn.sigmoid(gates)
    th = jnp.tanh(gates)
    i_g = sig[:, 0 * H:1 * H]
    f_g = sig[:, 1 * H:2 * H]
    o_g = sig[:, 3 * H:4 * H]
    g_g = th[:, 2 * H:3 * H]

    c_new = f_g * c + i_g * g_g
    h_new = o_g * jnp.tanh(c_new)

    # Head matmul over zero-padded head rows; lane-mask select tanh vs exp.
    heads = (jnp.dot(h_new.astype(mm), w_ref[H:, :],
                     preferred_element_type=jnp.float32) + bh_ref[...])
    lane = lax.broadcasted_iota(jnp.int32, heads.shape, 1)
    heads = jnp.where(lane < O, jnp.tanh(heads), jnp.exp(heads))

    # Pack everything into one lane-dense slab -> single unmasked store / DMA.
    pad = out_ref.shape[-1] - (2 * H + O2)
    pieces = [h_new, c_new, heads[:, :O2]]
    if pad:
        pieces.append(jnp.zeros((B, pad), jnp.float32))
    out_ref[...] = jnp.concatenate(pieces, axis=-1)


def stochastic_rnn_forward(x, state, packed):
    """One StochasticRNN step.  x: (B, D); state = (h, c) each (B, H).

    Returns ([out_mean, out_var], (h_new, c_new)) like the PyTorch module.
    """
    h, c = state
    B = x.shape[0]
    H, O = packed["hidden_dim"], packed["output_dim"]
    P = max(128, _round_up(2 * H + 2 * O, 128))

    xp = _input_projection(x, packed)                  # (B, 4H), hoisted

    full = lambda shape: pl.BlockSpec(shape, lambda: (0,) * len(shape))
    inputs = (xp, h, c, packed["w_rec"], packed["b_heads"])

    slab = pl.pallas_call(
        functools.partial(srnn_step_kernel,
                          dims=dict(hidden_dim=H, output_dim=O)),
        out_shape=jax.ShapeDtypeStruct((B, P), jnp.float32),
        in_specs=[full(a.shape) for a in inputs],
        out_specs=full((B, P)),
    )(*inputs)

    h_new = slab[:, :H]
    c_new = slab[:, H:2 * H]
    mean = slab[:, 2 * H:2 * H + O]
    var = slab[:, 2 * H + O:2 * H + 2 * O]
    return [mean, var], (h_new, c_new)


# ---------------------------------------------------------------------------
# Sequence kernel: grid=(T//Tc,), inner unrolled fori_loop over Tc steps,
# weights VMEM-resident, h/c carried in VMEM scratch, lane-dense heads output.
# ---------------------------------------------------------------------------
def srnn_seq_kernel(xp_ref, h0_ref, c0_ref, w_ref, bh_ref,
                    heads_ref, h_out_ref, c_out_ref,
                    h_scr, c_scr, *, dims, chunk):
    H, O = dims["hidden_dim"], dims["output_dim"]
    G4 = 4 * H
    mm = w_ref.dtype
    t = pl.program_id(0)

    @pl.when(t == 0)
    def _():
        h_scr[...] = h0_ref[...]
        c_scr[...] = c0_ref[...]

    # Hoisted out of the per-step loop (JAX does not CSE broadcast_in_dim).
    w_hh = w_ref[:H, :]
    w_heads = w_ref[H:, :]
    b_heads = bh_ref[...]
    B = xp_ref.shape[1]
    lane = lax.broadcasted_iota(jnp.int32, (B, G4), 1)
    mean_mask = lane < O

    def step(lt, carry):
        h, c = carry
        gates = xp_ref[lt] + jnp.dot(h.astype(mm), w_hh,
                                     preferred_element_type=jnp.float32)
        sig = jax.nn.sigmoid(gates)          # one full-vreg EUP pass
        th = jnp.tanh(gates)                 # one full-vreg EUP pass
        i_g = sig[:, 0 * H:1 * H]
        f_g = sig[:, 1 * H:2 * H]
        o_g = sig[:, 3 * H:4 * H]
        g_g = th[:, 2 * H:3 * H]
        c_new = f_g * c + i_g * g_g
        h_new = o_g * jnp.tanh(c_new)
        heads = (jnp.dot(h_new.astype(mm), w_heads,
                         preferred_element_type=jnp.float32) + b_heads)
        # Full 4H=128 lane write -> unmasked store; pad lanes hold exp(0)=1
        # and are sliced off on the host.
        heads_ref[lt] = jnp.where(mean_mask, jnp.tanh(heads), jnp.exp(heads))
        return h_new, c_new

    h_fin, c_fin = lax.fori_loop(0, chunk, step, (h_scr[...], c_scr[...]),
                                 unroll=True)
    h_scr[...] = h_fin
    c_scr[...] = c_fin

    @pl.when(t == pl.num_programs(0) - 1)
    def _():
        h_out_ref[...] = h_fin
        c_out_ref[...] = c_fin


def stochastic_rnn_sequence(xs, state, packed, *, chunk=None):
    """Run the StochasticRNN over a whole sequence xs: (T, B, D).

    Returns (means (T,B,O), vars (T,B,O), (h_T, c_T)).
    """
    h, c = state
    T, B, _ = xs.shape
    H, O = packed["hidden_dim"], packed["output_dim"]
    G4 = 4 * H
    if chunk is None:
        chunk = _pick_chunk(T)
    assert T % chunk == 0, "sequence length must be a multiple of the time chunk"

    xp = _input_projection(xs, packed)                 # (T, B, 4H), one big matmul

    full = lambda shape: pl.BlockSpec(shape, lambda i: (0,) * len(shape))

    out_shapes = (
        jax.ShapeDtypeStruct((T, B, G4), jnp.float32),  # lane-dense [mean|var|pad]
        jax.ShapeDtypeStruct((B, H), jnp.float32),      # h_T
        jax.ShapeDtypeStruct((B, H), jnp.float32),      # c_T
    )
    in_specs = [
        pl.BlockSpec((chunk, B, G4), lambda i: (i, 0, 0)),  # x_proj chunk
        full((B, H)),                                       # h0
        full((B, H)),                                       # c0
        full(packed["w_rec"].shape),                        # recurrent+head weights
        full(packed["b_heads"].shape),                      # head bias
    ]
    out_specs = (
        pl.BlockSpec((chunk, B, G4), lambda i: (i, 0, 0)),
        full((B, H)),
        full((B, H)),
    )

    heads, h_T, c_T = pl.pallas_call(
        functools.partial(srnn_seq_kernel,
                          dims=dict(hidden_dim=H, output_dim=O),
                          chunk=chunk),
        out_shape=out_shapes,
        grid=(T // chunk,),
        in_specs=in_specs,
        out_specs=out_specs,
        scratch_shapes=[pltpu.VMEM((B, H), jnp.float32),
                        pltpu.VMEM((B, H), jnp.float32)],
        compiler_params=pltpu.CompilerParams(
            dimension_semantics=("arbitrary",)),  # time recurrence is sequential
    )(xp, h, c, packed["w_rec"], packed["b_heads"])

    return heads[..., :O], heads[..., O:2 * O], (h_T, c_T)


# ---------------------------------------------------------------------------
# Parameter construction / packing / pure-JAX reference.
# ---------------------------------------------------------------------------
def make_params(key, input_dim, hidden_dim, output_dim):
    ks = jax.random.split(key, 8)
    s = 0.1
    return {
        # stored as (in, out) = transpose of the PyTorch (out, in) layout
        "wih": s * jax.random.normal(ks[0], (input_dim, 4 * hidden_dim), jnp.float32),
        "whh": s * jax.random.normal(ks[1], (hidden_dim, 4 * hidden_dim), jnp.float32),
        "bih": s * jax.random.normal(ks[2], (1, 4 * hidden_dim), jnp.float32),
        "bhh": s * jax.random.normal(ks[3], (1, 4 * hidden_dim), jnp.float32),
        "wm":  s * jax.random.normal(ks[4], (hidden_dim, output_dim), jnp.float32),
        "bm":  s * jax.random.normal(ks[5], (1, output_dim), jnp.float32),
        "wv":  s * jax.random.normal(ks[6], (hidden_dim, output_dim), jnp.float32),
        "bv":  s * jax.random.normal(ks[7], (1, output_dim), jnp.float32),
    }


def pack_params(params, input_dim, hidden_dim, output_dim, mm_dtype=jnp.float32):
    """Pack into the slabs described in the header (bf16 OK on v5e/v6e/v7x)."""
    D, H, O = input_dim, hidden_dim, output_dim
    G4, O2 = 4 * H, 2 * O
    assert O2 <= G4, "head width 2*O must fit in the 4*H lane extent"
    # TODO(synk): for 2*O > 4*H a separate (unpadded) head-weight slab is needed.

    w_in = params["wih"].astype(mm_dtype)                               # (D, 4H)
    b_gates = (params["bih"] + params["bhh"]).astype(jnp.float32)       # (1, 4H)

    w_heads = jnp.concatenate([params["wm"], params["wv"]], axis=-1)    # (H, 2O)
    w_heads = jnp.pad(w_heads, ((0, 0), (0, G4 - O2)))                  # (H, 4H)
    w_rec = jnp.concatenate([params["whh"], w_heads], axis=0).astype(mm_dtype)

    b_heads = jnp.concatenate([params["bm"], params["bv"]], axis=-1)
    b_heads = jnp.pad(b_heads, ((0, 0), (0, G4 - O2))).astype(jnp.float32)

    return {"w_in": w_in, "b_gates": b_gates, "w_rec": w_rec, "b_heads": b_heads,
            "input_dim": D, "hidden_dim": H, "output_dim": O}


def reference_forward(x, state, p):
    """Pure-JAX reference matching torch.nn.LSTMCell + heads."""
    h, c = state
    gates = x @ p["wih"] + h @ p["whh"] + p["bih"] + p["bhh"]
    H = h.shape[-1]
    i = jax.nn.sigmoid(gates[:, 0 * H:1 * H])
    f = jax.nn.sigmoid(gates[:, 1 * H:2 * H])
    g = jnp.tanh(gates[:, 2 * H:3 * H])
    o = jax.nn.sigmoid(gates[:, 3 * H:4 * H])
    c_new = f * c + i * g
    h_new = o * jnp.tanh(c_new)
    mean = jnp.tanh(h_new @ p["wm"] + p["bm"])
    var = jnp.exp(h_new @ p["wv"] + p["bv"])   # unclamped exp, like the PyTorch ref
    return [mean, var], (h_new, c_new)


# ---------------------------------------------------------------------------
if __name__ == "__main__":
    key = jax.random.PRNGKey(0)
    k_x, k_p, k_s = jax.random.split(key, 3)

    # batch=16 fills the f32 sublane tile and the packed bf16 (16,128) vreg.
    batch, input_dim, hidden_dim, output_dim, seq_len = 16, 16, 32, 8, 32

    params = make_params(k_p, input_dim, hidden_dim, output_dim)
    packed_f32 = pack_params(params, input_dim, hidden_dim, output_dim,
                             mm_dtype=jnp.float32)
    packed_bf16 = pack_params(params, input_dim, hidden_dim, output_dim,
                              mm_dtype=jnp.bfloat16)

    x = jax.random.normal(k_x, (batch, input_dim), jnp.float32)
    # zero_state / default LSTMCell state -> zero (h, c)
    h0 = jnp.zeros((batch, hidden_dim), jnp.float32)
    c0 = jnp.zeros((batch, hidden_dim), jnp.float32)

    # ---- single step, f32 matmul inputs ----------------------------------
    (mean, var), (h1, c1) = stochastic_rnn_forward(x, (h0, c0), packed_f32)
    jax.block_until_ready((mean, var, h1, c1))

    (rmean, rvar), (rh, rc) = reference_forward(x, (h0, c0), params)
    assert jnp.allclose(mean, rmean, atol=1e-5), "mean mismatch"
    assert jnp.allclose(var, rvar, atol=1e-5), "var mismatch"
    assert jnp.allclose(h1, rh, atol=1e-5), "h mismatch"
    assert jnp.allclose(c1, rc, atol=1e-5), "c mismatch"

    # ---- single step, bf16 matmul inputs (works on v5e/v6e/v7x MXU) ------
    (mean_b, var_b), (h1_b, c1_b) = stochastic_rnn_forward(x, (h0, c0), packed_bf16)
    jax.block_until_ready((mean_b, var_b, h1_b, c1_b))
    assert jnp.allclose(mean_b, rmean, atol=5e-2, rtol=5e-2), "bf16 mean mismatch"
    assert jnp.allclose(var_b, rvar, atol=5e-2, rtol=5e-2), "bf16 var mismatch"

    # ---- chunked in-kernel time loop over a sequence ----------------------
    xs = jax.random.normal(k_s, (seq_len, batch, input_dim), jnp.float32)
    means, vars_, (hT, cT) = stochastic_rnn_sequence(xs, (h0, c0), packed_f32)
    jax.block_until_ready((means, vars_, hT, cT))

    def scan_step(carry, xt):
        (m, v), new_carry = reference_forward(xt, carry, params)
        return new_carry, (m, v)

    (rhT, rcT), (rmeans, rvars) = lax.scan(scan_step, (h0, c0), xs)
    assert jnp.allclose(means, rmeans, atol=1e-4), "seq mean mismatch"
    assert jnp.allclose(vars_, rvars, atol=1e-4), "seq var mismatch"
    assert jnp.allclose(hT, rhT, atol=1e-4), "seq h mismatch"
    assert jnp.allclose(cT, rcT, atol=1e-4), "seq c mismatch"

    print("KERNEL_OK")
</pallas_src>

<mosaic_0001>
module attributes {stable_mosaic.version = 11 : i64} {
  func.func @srnn_step_kernel(%arg0: memref<16x128xf32, #tpu.memory_space<vmem>>, %arg1: memref<16x32xf32, #tpu.memory_space<vmem>>, %arg2: memref<16x32xf32, #tpu.memory_space<vmem>>, %arg3: memref<64x128xf32, #tpu.memory_space<vmem>>, %arg4: memref<1x128xf32, #tpu.memory_space<vmem>>, %arg5: memref<16x128xf32, #tpu.memory_space<vmem>>) attributes {dimension_semantics = [], scalar_prefetch = 0 : i64, scratch_operands = 0 : i64, tpu.core_type = #tpu.core_type<tc>} {
    %c0 = arith.constant 0 : index
    %c0_0 = arith.constant 0 : index
    %0 = vector.load %arg1[%c0, %c0_0] : memref<16x32xf32, #tpu.memory_space<vmem>>, vector<16x32xf32>
    %c0_1 = arith.constant 0 : index
    %c0_2 = arith.constant 0 : index
    %1 = vector.load %arg2[%c0_1, %c0_2] : memref<16x32xf32, #tpu.memory_space<vmem>>, vector<16x32xf32>
    %c0_3 = arith.constant 0 : index
    %c0_4 = arith.constant 0 : index
    %2 = vector.load %arg0[%c0_3, %c0_4] : memref<16x128xf32, #tpu.memory_space<vmem>>, vector<16x128xf32>
    %c0_5 = arith.constant 0 : index
    %c0_6 = arith.constant 0 : index
    %3 = vector.load %arg3[%c0_5, %c0_6] : memref<64x128xf32, #tpu.memory_space<vmem>>, vector<32x128xf32>
    %cst = arith.constant dense<0.000000e+00> : vector<16x128xf32>
    %4 = tpu.matmul %0, %3, %cst {dimension_numbers = #tpu.dot_dimension_numbers<[1], [0], [0], [1], [0, 0, 1, 1], [], []>} : vector<16x32xf32>, vector<32x128xf32>, vector<16x128xf32> -> vector<16x128xf32>
    %5 = arith.addf %2, %4 : vector<16x128xf32>
    %6 = arith.negf %5 : vector<16x128xf32>
    %7 = math.exp %6 : vector<16x128xf32>
    %cst_7 = arith.constant 1.000000e+00 : f32
    %8 = vector.broadcast %cst_7 : f32 to vector<16x128xf32>
    %9 = arith.addf %8, %7 : vector<16x128xf32>
    %10 = arith.divf %8, %9 : vector<16x128xf32>
    %11 = math.tanh %5 : vector<16x128xf32>
    %12 = vector.extract_strided_slice %10 {offsets = [0, 0], sizes = [16, 32], strides = [1, 1]} : vector<16x128xf32> to vector<16x32xf32>
    %13 = vector.extract_strided_slice %10 {offsets = [0, 32], sizes = [16, 32], strides = [1, 1]} : vector<16x128xf32> to vector<16x32xf32>
    %14 = vector.extract_strided_slice %10 {offsets = [0, 96], sizes = [16, 32], strides = [1, 1]} : vector<16x128xf32> to vector<16x32xf32>
    %15 = vector.extract_strided_slice %11 {offsets = [0, 64], sizes = [16, 32], strides = [1, 1]} : vector<16x128xf32> to vector<16x32xf32>
    %16 = arith.mulf %13, %1 : vector<16x32xf32>
    %17 = arith.mulf %12, %15 : vector<16x32xf32>
    %18 = arith.addf %16, %17 : vector<16x32xf32>
    %19 = math.tanh %18 : vector<16x32xf32>
    %20 = arith.mulf %14, %19 : vector<16x32xf32>
    %c32 = arith.constant 32 : index
    %c0_8 = arith.constant 0 : index
    %21 = vector.load %arg3[%c32, %c0_8] : memref<64x128xf32, #tpu.memory_space<vmem>>, vector<32x128xf32>
    %cst_9 = arith.constant dense<0.000000e+00> : vector<16x128xf32>
    %22 = tpu.matmul %20, %21, %cst_9 {dimension_numbers = #tpu.dot_dimension_numbers<[1], [0], [0], [1], [0, 0, 1, 1], [], []>} : vector<16x32xf32>, vector<32x128xf32>, vector<16x128xf32> -> vector<16x128xf32>
    %c0_10 = arith.constant 0 : index
    %c0_11 = arith.constant 0 : index
    %23 = vector.load %arg4[%c0_10, %c0_11] : memref<1x128xf32, #tpu.memory_space<vmem>>, vector<1x128xf32>
    %24 = vector.broadcast %23 : vector<1x128xf32> to vector<16x128xf32>
    %25 = arith.addf %22, %24 : vector<16x128xf32>
    %26 = tpu.iota {dimensions = array<i32: 1>} : vector<16x128xi32>
    %c8_i32 = arith.constant 8 : i32
    %27 = vector.broadcast %c8_i32 : i32 to vector<16x128xi32>
    %28 = arith.cmpi slt, %26, %27 : vector<16x128xi32>
    %29 = math.tanh %25 : vector<16x128xf32>
    %30 = math.exp %25 : vector<16x128xf32>
    %31 = arith.select %28, %29, %30 : vector<16x128xi1>, vector<16x128xf32>
    %32 = vector.extract_strided_slice %31 {offsets = [0, 0], sizes = [16, 16], strides = [1, 1]} : vector<16x128xf32> to vector<16x16xf32>
    %cst_12 = arith.constant 0.000000e+00 : f32
    %33 = vector.broadcast %cst_12 : f32 to vector<16x48xf32>
    %34 = tpu.concatenate %20, %18, %32, %33 in 1 : vector<16x32xf32>, vector<16x32xf32>, vector<16x16xf32>, vector<16x48xf32> -> vector<16x128xf32>
    %c0_13 = arith.constant 0 : index
    %c0_14 = arith.constant 0 : index
    %35 = vector.load %arg5[%c0_13, %c0_14] : memref<16x128xf32, #tpu.memory_space<vmem>>, vector<16x128xf32>
    tpu.vector_store %arg5[%c0_13, %c0_14], %34 {strides = array<i32>} : memref<16x128xf32, #tpu.memory_space<vmem>>, vector<16x128xf32>,
    return
  }
}

</mosaic_0001>

<llo_original>
// kernel: tpu_custom_call.1
$region0: #{tpu_custom_call.1}
  #allocation0 [shape = 'u32[]', space=smem, size = 0x4, offset = 0x4, fixed_abs, tag = 'smem constant byte address 0x4 - core index']
  #allocation1 [shape = 'u32[144,128]{1,0:T(1,128)}', space=vmem, size = 0x12000, scoped, tag = 'internal scratch']
  %s0 = inlined_call_operand.hbm [shape: f32[16,128], index: 0, kind: input, shape index: {}]
  %s1 = inlined_call_operand.hbm [shape: f32[16,32], index: 1, kind: input, shape index: {}]
  %s2 = inlined_call_operand.hbm [shape: f32[16,32], index: 2, kind: input, shape index: {}]
  %s3 = inlined_call_operand.hbm [shape: f32[64,128], index: 3, kind: input, shape index: {}]
  %s4 = inlined_call_operand.vmem [shape: f32[1,128], index: 4, kind: input, shape index: {}]
  %s5 = inlined_call_operand.hbm [shape: f32[16,128], index: 5, kind: output, shape index: {}]
  %s6 = sld [smem:[#allocation0]]
  $region46: #{tpu_custom_call.1} parent=0
    _
  %s8 = ssub.s32 1, %s6
  %s9 = scalar_select 0, %s8, %s6
  $region1: #{tpu_custom_call.1} parent=0
    #allocation2 [shape = 'u8[8192]{0}', space=vmem, size = 0x2000, scoped, tag = 'input window, operand 0, single buffered']
    #allocation3 [shape = 's32[1]{0}', space=sflag, size = 0x4, scoped, tag = 'scoped memory for tpu_custom_call.1']
    #allocation4 [shape = 's32[1]{0}', space=sflag, size = 0x4, scoped, tag = 'scoped memory for tpu_custom_call.1']
    #allocation5 [shape = 'u8[8192]{0}', space=vmem, size = 0x2000, scoped, tag = 'input window, operand 1, single buffered']
    #allocation6 [shape = 's32[1]{0}', space=sflag, size = 0x4, scoped, tag = 'scoped memory for tpu_custom_call.1']
    #allocation7 [shape = 'u8[8192]{0}', space=vmem, size = 0x2000, scoped, tag = 'input window, operand 2, single buffered']
    #allocation8 [shape = 'u8[32768]{0}', space=vmem, size = 0x8000, scoped, tag = 'input window, operand 3, single buffered']
    #allocation9 [shape = 's32[1]{0}', space=sflag, size = 0x4, scoped, tag = 'scoped memory for tpu_custom_call.1']
    #allocation10 [shape = 'u8[8192]{0}', space=vmem, size = 0x2000, scoped, tag = 'output window, operand 0, single buffered']
    %10 = vsyncpa [#allocation3], 0
    %11 = vsyncpa [#allocation6], 0
    %12 = vsyncpa [#allocation9], 0
    %13 = vsyncpa [#allocation4], 0
    // Predicated region
    $region2: #{tpu_custom_call.1} parent=1 // pred_check
      _
    $region3: #{tpu_custom_call.1} parent=1 // pred_check_branch
      %15 = sbr.rel (0) target = $region5
    $region4: #{tpu_custom_call.1} parent=1 // pred_region
      %s17 = ssub.s32 256, 256
      %18 = vsyncadd [#allocation3], %s17
      %s19 = sshll.u32 [#allocation2], 4
      %s20 = int_to_ptr.vmem [resolvable:$true] %s19
      %25 = dma.hbm_to_vmem [thread:$0]  %s0, 256, %s20, [#allocation3], 128, 128, 8
    $region5: #{tpu_custom_call.1} parent=1 // pred_fallthru
      _
    // Predicated region
    $region6: #{tpu_custom_call.1} parent=1 // pred_check
      _
    $region7: #{tpu_custom_call.1} parent=1 // pred_check_branch
      %27 = sbr.rel (0) target = $region9
    $region8: #{tpu_custom_call.1} parent=1 // pred_region
      %s29 = ssub.s32 256, 256
      %30 = vsyncadd [#allocation6], %s29
      %s31 = sshll.u32 [#allocation5], 4
      %s32 = int_to_ptr.vmem [resolvable:$true] %s31
      %37 = dma.hbm_to_vmem [thread:$0]  %s1, 256, %s32, [#allocation6], 128, 128, 8
    $region9: #{tpu_custom_call.1} parent=1 // pred_fallthru
      _
    // Predicated region
    $region10: #{tpu_custom_call.1} parent=1 // pred_check
      _
    $region11: #{tpu_custom_call.1} parent=1 // pred_check_branch
      %39 = sbr.rel (0) target = $region13
    $region12: #{tpu_custom_call.1} parent=1 // pred_region
      %s41 = ssub.s32 256, 256
      %42 = vsyncadd [#allocation6], %s41
      %s43 = sshll.u32 [#allocation7], 4
      %s44 = int_to_ptr.vmem [resolvable:$true] %s43
      %49 = dma.hbm_to_vmem [thread:$0]  %s2, 256, %s44, [#allocation6], 128, 128, 8
    $region13: #{tpu_custom_call.1} parent=1 // pred_fallthru
      _
    // Predicated region
    $region14: #{tpu_custom_call.1} parent=1 // pred_check
      _
    $region15: #{tpu_custom_call.1} parent=1 // pred_check_branch
      %51 = sbr.rel (0) target = $region17
    $region16: #{tpu_custom_call.1} parent=1 // pred_region
      %s53 = ssub.s32 1024, 1024
      %54 = vsyncadd [#allocation9], %s53
      %s55 = sshll.u32 [#allocation8], 4
      %s56 = int_to_ptr.vmem [resolvable:$true] %s55
      %61 = dma.hbm_to_vmem [thread:$0]  %s3, 1024, %s56, [#allocation9], 128, 128, 8
    $region17: #{tpu_custom_call.1} parent=1 // pred_fallthru
      _
    // Predicated region
    $region18: #{tpu_custom_call.1} parent=1 // pred_check
      _
    $region19: #{tpu_custom_call.1} parent=1 // pred_check_branch
      %63 = sbr.rel (0) target = $region21
    $region20: #{tpu_custom_call.1} parent=1 // pred_region
      _
    $region21: #{tpu_custom_call.1} parent=1 // pred_fallthru
      _
    // Predicated region
    $region22: #{tpu_custom_call.1} parent=1 // pred_check
      _
    $region23: #{tpu_custom_call.1} parent=1 // pred_check_branch
      %65 = sbr.rel (0) target = $region25
    $region24: #{tpu_custom_call.1} parent=1 // pred_region
      %66 = dma.done [#allocation3], 256
    $region25: #{tpu_custom_call.1} parent=1 // pred_fallthru
      _
    // Predicated region
    $region26: #{tpu_custom_call.1} parent=1 // pred_check
      _
    $region27: #{tpu_custom_call.1} parent=1 // pred_check_branch
      %68 = sbr.rel (0) target = $region29
    $region28: #{tpu_custom_call.1} parent=1 // pred_region
      %69 = dma.done [#allocation6], 256
    $region29: #{tpu_custom_call.1} parent=1 // pred_fallthru
      _
    // Predicated region
    $region30: #{tpu_custom_call.1} parent=1 // pred_check
      _
    $region31: #{tpu_custom_call.1} parent=1 // pred_check_branch
      %71 = sbr.rel (0) target = $region33
    $region32: #{tpu_custom_call.1} parent=1 // pred_region
      %72 = dma.done [#allocation6], 256
    $region33: #{tpu_custom_call.1} parent=1 // pred_fallthru
      _
    // Predicated region
    $region34: #{tpu_custom_call.1} parent=1 // pred_check
      _
    $region35: #{tpu_custom_call.1} parent=1 // pred_check_branch
      %74 = sbr.rel (0) target = $region37
    $region36: #{tpu_custom_call.1} parent=1 // pred_region
      %75 = dma.done [#allocation9], 1024
    $region37: #{tpu_custom_call.1} parent=1 // pred_fallthru
      _
    %v76 = vld [vmem:[#allocation5] sm:$0xff]
    %v77 = vld [vmem:[#allocation5 + $0x8] sm:$0xff]
    %v78 = vld [vmem:[#allocation7] sm:$0xff]
    %v79 = vld [vmem:[#allocation7 + $0x8] sm:$0xff]
    %v80 = vld [vmem:[#allocation2] sm:$0xff]
    %v81 = vld [vmem:[#allocation2 + $0x8] sm:$0xff]
    %v82 = vld [vmem:[#allocation8] sm:$0xff]
    %v83 = vld [vmem:[#allocation8 + $0x8] sm:$0xff]
    %v84 = vld [vmem:[#allocation8 + $0x10] sm:$0xff]
    %v85 = vld [vmem:[#allocation8 + $0x18] sm:$0xff]
    %vm86 = vcmask 261120
    %v88 = vsel %vm86, %v76, 0
    %v91 = vsel %vm86, %v77, 0
    %93 = vmatprep.subr.mxu0 0.0
    %94 = vmatpush1.msra.mxu0 %v82
    %95 = vmatprep.subr.mxu0 0.0
    %96 = vmatpush1.msra.mxu0 %v83
    %97 = vmatprep.subr.mxu0 0.0
    %98 = vmatpush1.msra.mxu0 %v84
    %99 = vmatprep.subr.mxu0 0.0
    %100 = vmatpush1.msra.mxu0 %v85
    %101 = vmatprep.subr.mxu0 0.0
    %102 = vmatpush1.msra.mxu0 0.0
    %103 = vmatprep.subr.mxu0 0.0
    %104 = vmatpush1.msra.mxu0 0.0
    %105 = vmatprep.subr.mxu0 0.0
    %106 = vmatpush1.msra.mxu0 0.0
    %107 = vmatprep.subr.mxu0 0.0
    %108 = vmatpush1.msra.mxu0 0.0
    %109 = vmatprep.subr.mxu0 0.0
    %110 = vmatpush1.msra.mxu0 0.0
    %111 = vmatprep.subr.mxu0 0.0
    %112 = vmatpush1.msra.mxu0 0.0
    %113 = vmatprep.subr.mxu0 0.0
    %114 = vmatpush1.msra.mxu0 0.0
    %115 = vmatprep.subr.mxu0 0.0
    %116 = vmatpush1.msra.mxu0 0.0
    %117 = vmatprep.subr.mxu0 0.0
    %118 = vmatpush1.msra.mxu0 0.0
    %119 = vmatprep.subr.mxu0 0.0
    %120 = vmatpush1.msra.mxu0 0.0
    %121 = vmatprep.subr.mxu0 0.0
    %122 = vmatpush1.msra.mxu0 0.0
    %123 = vmatprep.subr.mxu0 0.0
    %124 = vmatpush1.msra.mxu0 0.0
    %125 = vmatprep.subr.mxu0 0.0
    %126 = vmatpush1.msra.mxu0 0.0
    %127 = vmatprep.subr.mxu0 0.0
    %128 = vmatpush1.msra.mxu0 0.0
    %129 = vmatprep.subr.mxu0 0.0
    %130 = vmatpush1.msra.mxu0 0.0
    %131 = vmatprep.subr.mxu0 0.0
    %132 = vmatpush1.msra.mxu0 0.0
    %133 = vmatprep.subr.mxu0 0.0
    %134 = vmatpush1.msra.mxu0 0.0
    %135 = vmatprep.subr.mxu0 0.0
    %136 = vmatpush1.msra.mxu0 0.0
    %137 = vmatprep.subr.mxu0 0.0
    %138 = vmatpush1.msra.mxu0 0.0
    %139 = vmatprep.subr.mxu0 0.0
    %140 = vmatpush1.msra.mxu0 0.0
    %141 = vmatprep.subr.mxu0 0.0
    %142 = vmatpush1.msra.mxu0 0.0
    %143 = vmatprep.subr.mxu0 0.0
    %144 = vmatpush1.msra.mxu0 0.0
    %145 = vmatprep.subr.mxu0 0.0
    %146 = vmatpush1.msra.mxu0 0.0
    %147 = vmatprep.subr.mxu0 0.0
    %148 = vmatpush1.msra.mxu0 0.0
    %149 = vmatprep.subr.mxu0 0.0
    %150 = vmatpush1.msra.mxu0 0.0
    %151 = vmatprep.subr.mxu0 0.0
    %152 = vmatpush1.msra.mxu0 0.0
    %153 = vmatprep.subr.mxu0 0.0
    %154 = vmatpush1.msra.mxu0 0.0
    %155 = vmatprep.subr.mxu0 0.0
    %156 = vmatpush1.msra.mxu0 0.0
    %157 = vmatprep.mubr.f32.mxu0 0.0
    %158 = vmatmul.mubr.f32.gmra.mrb[0].mxu0 %v88
    %v159 = vpop.f32.mrb[0].mxu0
    %v160 = vadd.f32 0.0, %v159
    %v161 = vpop.f32.mrb[0].mxu0
    %162 = vmatprep.mubr.f32.mxu0 0.0
    %163 = vmatmul.mubr.f32.gmra.mrb[0].mxu0 %v91
    %v164 = vpop.f32.mrb[0].mxu0
    %v165 = vadd.f32 0.0, %v164
    %v166 = vpop.f32.mrb[0].mxu0
    %167 = vdwg.mxu0
    %v168 = vadd.f32 %v80, %v160
    %v169 = vadd.f32 %v81, %v165
    %v170 = vxor.u32 %v168, 2147483648
    %v171 = vxor.u32 %v169, 2147483648
    %v172 = vmul.f32 %v170, 1.442695
    %v173 = vpow.pop %v172
    %v174 = vmul.f32 %v171, 1.442695
    %v175 = vpow.pop %v174
    %v176 = vadd.f32 %v173, 1.0
    %v177 = vadd.f32 %v175, 1.0
    %v178 = vrcp.pop %v176
    %v179 = vmul.f32 1.0, %v178
    %v180 = vrcp.pop %v177
    %v181 = vmul.f32 1.0, %v180
    %v182 = vtanh.pop %v168
    %v183 = vtanh.pop %v169
    %186 = vrot.lane.b32.xlu0 %v78, 32
    %v187 = vpop.permute.xlu0 %186
    %188 = vrot.lane.b32.xlu0 %v79, 32
    %v189 = vpop.permute.xlu0 %188
    %v192 = vmul.f32 %v179, %v187
    %v193 = vmul.f32 %v181, %v189
    %196 = vrot.lane.b32.xlu0 %v182, 64
    %v197 = vpop.permute.xlu0 %196
    %198 = vrot.lane.b32.xlu0 %v183, 64
    %v199 = vpop.permute.xlu0 %198
    %v202 = vmul.f32 %v179, %v197
    %v203 = vmul.f32 %v181, %v199
    %206 = vrot.lane.b32.xlu0 %v202, 32
    %v207 = vpop.permute.xlu0 %206
    %208 = vrot.lane.b32.xlu0 %v203, 32
    %v209 = vpop.permute.xlu0 %208
    %v212 = vadd.f32 %v192, %v207
    %v213 = vadd.f32 %v193, %v209
    %v214 = vtanh.pop %v212
    %v215 = vtanh.pop %v213
    %218 = vrot.lane.b32.xlu0 %v214, 64
    %v219 = vpop.permute.xlu0 %218
    %220 = vrot.lane.b32.xlu0 %v215, 64
    %v221 = vpop.permute.xlu0 %220
    %v224 = vmul.f32 %v179, %v219
    %v225 = vmul.f32 %v181, %v221
    %v226 = vld [vmem:[#allocation8 + $0x20] sm:$0xff]
    %v227 = vld [vmem:[#allocation8 + $0x28] sm:$0xff]
    %v228 = vld [vmem:[#allocation8 + $0x30] sm:$0xff]
    %v229 = vld [vmem:[#allocation8 + $0x38] sm:$0xff]
    %v230 = vld [vmem:[%s4] sm:$0x1]
    %v232 = vlaneseq
    %v233 = vshrl.u32 %v232, 7
    %v234 = vsub.s32 0, %v233
    %v235 = vrot.slane %v230, %v234
    %239 = vrot.lane.b32.xlu0 %v224, 32
    %v240 = vpop.permute.xlu0 %239
    %241 = vrot.lane.b32.xlu0 %v225, 32
    %v242 = vpop.permute.xlu0 %241
    %v243 = vsel %vm86, %v240, 0
    %v245 = vsel %vm86, %v242, 0
    %247 = vmatprep.subr.mxu0 0.0
    %248 = vmatpush1.msra.mxu0 %v226
    %249 = vmatprep.subr.mxu0 0.0
    %250 = vmatpush1.msra.mxu0 %v227
    %251 = vmatprep.subr.mxu0 0.0
    %252 = vmatpush1.msra.mxu0 %v228
    %253 = vmatprep.subr.mxu0 0.0
    %254 = vmatpush1.msra.mxu0 %v229
    %255 = vmatprep.subr.mxu0 0.0
    %256 = vmatpush1.msra.mxu0 0.0
    %257 = vmatprep.subr.mxu0 0.0
    %258 = vmatpush1.msra.mxu0 0.0
    %259 = vmatprep.subr.mxu0 0.0
    %260 = vmatpush1.msra.mxu0 0.0
    %261 = vmatprep.subr.mxu0 0.0
    %262 = vmatpush1.msra.mxu0 0.0
    %263 = vmatprep.subr.mxu0 0.0
    %264 = vmatpush1.msra.mxu0 0.0
    %265 = vmatprep.subr.mxu0 0.0
    %266 = vmatpush1.msra.mxu0 0.0
    %267 = vmatprep.subr.mxu0 0.0
    %268 = vmatpush1.msra.mxu0 0.0
    %269 = vmatprep.subr.mxu0 0.0
    %270 = vmatpush1.msra.mxu0 0.0
    %271 = vmatprep.subr.mxu0 0.0
    %272 = vmatpush1.msra.mxu0 0.0
    %273 = vmatprep.subr.mxu0 0.0
    %274 = vmatpush1.msra.mxu0 0.0
    %275 = vmatprep.subr.mxu0 0.0
    %276 = vmatpush1.msra.mxu0 0.0
    %277 = vmatprep.subr.mxu0 0.0
    %278 = vmatpush1.msra.mxu0 0.0
    %279 = vmatprep.subr.mxu0 0.0
    %280 = vmatpush1.msra.mxu0 0.0
    %281 = vmatprep.subr.mxu0 0.0
    %282 = vmatpush1.msra.mxu0 0.0
    %283 = vmatprep.subr.mxu0 0.0
    %284 = vmatpush1.msra.mxu0 0.0
    %285 = vmatprep.subr.mxu0 0.0
    %286 = vmatpush1.msra.mxu0 0.0
    %287 = vmatprep.subr.mxu0 0.0
    %288 = vmatpush1.msra.mxu0 0.0
    %289 = vmatprep.subr.mxu0 0.0
    %290 = vmatpush1.msra.mxu0 0.0
    %291 = vmatprep.subr.mxu0 0.0
    %292 = vmatpush1.msra.mxu0 0.0
    %293 = vmatprep.subr.mxu0 0.0
    %294 = vmatpush1.msra.mxu0 0.0
    %295 = vmatprep.subr.mxu0 0.0
    %296 = vmatpush1.msra.mxu0 0.0
    %297 = vmatprep.subr.mxu0 0.0
    %298 = vmatpush1.msra.mxu0 0.0
    %299 = vmatprep.subr.mxu0 0.0
    %300 = vmatpush1.msra.mxu0 0.0
    %301 = vmatprep.subr.mxu0 0.0
    %302 = vmatpush1.msra.mxu0 0.0
    %303 = vmatprep.subr.mxu0 0.0
    %304 = vmatpush1.msra.mxu0 0.0
    %305 = vmatprep.subr.mxu0 0.0
    %306 = vmatpush1.msra.mxu0 0.0
    %307 = vmatprep.subr.mxu0 0.0
    %308 = vmatpush1.msra.mxu0 0.0
    %309 = vmatprep.subr.mxu0 0.0
    %310 = vmatpush1.msra.mxu0 0.0
    %311 = vmatprep.mubr.f32.mxu0 0.0
    %312 = vmatmul.mubr.f32.gmra.mrb[0].mxu0 %v243
    %v313 = vpop.f32.mrb[0].mxu0
    %v314 = vadd.f32 %v235, %v313
    %v315 = vpop.f32.mrb[0].mxu0
    %316 = vmatprep.mubr.f32.mxu0 0.0
    %317 = vmatmul.mubr.f32.gmra.mrb[0].mxu0 %v245
    %v318 = vpop.f32.mrb[0].mxu0
    %v319 = vadd.f32 %v235, %v318
    %v320 = vpop.f32.mrb[0].mxu0
    %321 = vdwg.mxu0
    %v322 = vlaneseq
    %v323 = vand.u32 %v322, 127
    %vm324 = vcmp.lt.s32.totalorder %v323, 8
    %v325 = vtanh.pop %v314
    %v326 = vtanh.pop %v319
    %v327 = vmul.f32 %v314, 1.442695
    %v328 = vpow.pop %v327
    %v329 = vmul.f32 %v319, 1.442695
    %v330 = vpow.pop %v329
    %v331 = vsel %vm324, %v325, %v328
    %v332 = vsel %vm324, %v326, %v330
    %337 = vrot.lane.b32.xlu0 %v331, 64
    %v338 = vpop.permute.xlu0 %337
    %339 = vrot.lane.b32.xlu0 %v332, 64
    %v340 = vpop.permute.xlu0 %339
    %v343 = vsel %vm86, %v240, %v212
    %v344 = vsel %vm86, %v242, %v213
    %vm345 = vcmask 523264
    %v346 = vsel %vm345, %v343, %v338
    %v347 = vsel %vm345, %v344, %v340
    %vm348 = vcmask 654336
    %v349 = vsel %vm348, %v346, 0.0
    %v350 = vsel %vm348, %v347, 0.0
    %351 = vst [vmem:[#allocation10] sm:$0xff] %v349
    %352 = vst [vmem:[#allocation10 + $0x8] sm:$0xff] %v350
    // Predicated region
    $region38: #{tpu_custom_call.1} parent=1 // pred_check
      _
    $region39: #{tpu_custom_call.1} parent=1 // pred_check_branch
      %354 = sbr.rel (0) target = $region41
    $region40: #{tpu_custom_call.1} parent=1 // pred_region
      %s356 = ssub.s32 256, 256
      %357 = vsyncadd [#allocation4], %s356
      %s358 = sshll.u32 [#allocation10], 4
      %s359 = int_to_ptr.vmem [resolvable:$true] %s358
      %364 = dma.vmem_to_hbm [thread:$0]  %s359, 256, %s5, [#allocation4], 128, 128, 8
    $region41: #{tpu_custom_call.1} parent=1 // pred_fallthru
      _
    // Predicated region
    $region42: #{tpu_custom_call.1} parent=1 // pred_check
      _
    $region43: #{tpu_custom_call.1} parent=1 // pred_check_branch
      %366 = sbr.rel (0) target = $region45
    $region44: #{tpu_custom_call.1} parent=1 // pred_region
      %367 = dma.done [#allocation4], 256
    $region45: #{tpu_custom_call.1} parent=1 // pred_fallthru
      _
    %368 = vsyncpa [#allocation3], 1
    %369 = vsyncpa [#allocation6], 1
    %370 = vsyncpa [#allocation9], 1
    %371 = vsyncpa [#allocation4], 1

</llo_original>
